<compile_context>
chip_gen: v6e
topology: v6e:2x2x1
jax: 0.10.0
libtpu: 0.0.40
codegen_flags: <defaults>
</compile_context>

<pallas_src>
from functools import partial
from math import sqrt

import jax
import jax.numpy as jnp
from jax.experimental import pallas as pl
from jax.experimental.pallas import tpu as pltpu

_LANE = 128
_TB_CAP = 512          # max batch-tile rows; multiple of 256 (v6e/v7x MXU M dimension)


def _round_up(n, m):
    return ((n + m - 1) // m) * m


# --------------------------------------------------------------------------- kernel


def _lstm_ae_kernel(x_ref, we_ref, be_ref, wd_ref, bd_ref, o_ref, *, out_dim, compact):
    """Fused single-step encoder + decoder LSTM cells for one batch tile.

    x_ref : (TB, Din)     f32  input tile
    we_ref: (Din, 3*Hp)   bf16 encoder [i|g|o] weights, each gate padded to Hp lanes
    be_ref: (1, 3*Hp)     f32  encoder b_ih + b_hh (padding lanes zero)
    wd_ref: (Hp, 128)     bf16 compact decoder weights (all gates in one lane block),
            or (Hp, 3*Op) bf16 per-gate-padded layout when `compact` is False
    bd_ref: matching f32 decoder bias
    o_ref : (TB, out_dim) f32  compact decoder hidden-state output
    """
    Hp = we_ref.shape[1] // 3

    xb = x_ref[...].astype(jnp.bfloat16)

    # ---- encoder cell (h0 = c0 = 0 -> W_hh and the forget gate drop out exactly) ----
    gates_e = jnp.dot(xb, we_ref[...], preferred_element_type=jnp.float32) + be_ref[...]
    i_e = jax.nn.sigmoid(gates_e[:, 0 * Hp:1 * Hp])   # 128-aligned slices: free selects
    g_e = jnp.tanh(gates_e[:, 1 * Hp:2 * Hp])
    o_e = jax.nn.sigmoid(gates_e[:, 2 * Hp:3 * Hp])
    # padding lanes: zero weights/bias -> tanh(0) = 0 -> h_e padding lanes are exactly 0
    h_e = o_e * jnp.tanh(i_e * g_e)                   # (TB, Hp) f32
    hb = h_e.astype(jnp.bfloat16)

    # ---- decoder cell (h0 = c0 = 0) ----
    gates_d = jnp.dot(hb, wd_ref[...], preferred_element_type=jnp.float32) + bd_ref[...]
    if compact:
        # All three gates live in one 128-lane block (see _pack_decoder_compact):
        #   lanes [0,O) = g, [O,2O) = i/2, [2O,3O) = o/2 (i/2, o/2 mirrored near lane L).
        # One tanh pass gives tanh(g) and, via sigmoid(x) = 0.5*tanh(x/2) + 0.5,
        # also sigmoid(i) / sigmoid(o): 2 EUP passes total instead of 4.
        L, O = wd_ref.shape[1], out_dim
        t = jnp.tanh(gates_d)                                       # EUP pass 1
        sig_i = 0.5 * pltpu.roll(t, L - O, axis=1) + 0.5            # i -> lanes [0,O)
        sig_o = 0.5 * pltpu.roll(t, L - 2 * O, axis=1) + 0.5        # o -> lanes [0,O)
        h_d = sig_o * jnp.tanh(sig_i * t)                           # EUP pass 2
        o_ref[...] = h_d[:, :O].astype(o_ref.dtype)
    else:
        # Fallback for large output_layer: per-gate 128-lane-padded blocks.
        Op = wd_ref.shape[1] // 3
        i_d = jax.nn.sigmoid(gates_d[:, 0 * Op:1 * Op])
        g_d = jnp.tanh(gates_d[:, 1 * Op:2 * Op])
        o_d = jax.nn.sigmoid(gates_d[:, 2 * Op:3 * Op])
        h_d = o_d * jnp.tanh(i_d * g_d)
        o_ref[...] = h_d[:, :out_dim].astype(o_ref.dtype)


# ------------------------------------------------------------------------- wrapper


def _pick_batch_tile(batch):
    """Batch-tile rows.
      * large batches : fixed 512-row tiles (multiple of 256 -> full MXU M pass on
        v6e/v7x) with a cdiv grid; Pallas handles the ragged last block,
      * mid-size      : two tiles so the "parallel" batch axis feeds both v7x TCs
        (a no-op cost on single-TC v5e/v6e),
      * tiny          : a single tile."""
    if batch >= 2 * _TB_CAP:
        return _TB_CAP
    if batch >= 16:
        return _round_up(pl.cdiv(batch, 2), 8)
    return batch


def lstm_autoencoder_forward(x, packed):
    """x: (B, input_layer) f32 (the module's x.view(B, 1, -1) with seq_len == 1).
    Returns (B,) f32 when output_layer == 1 (matching torch .squeeze()),
    else (B, output_layer)."""
    we_p, be_p, wd_p, bd_p, out_dim, compact = packed
    B, Din = x.shape

    tb = _pick_batch_tile(B)
    grid = (pl.cdiv(B, tb),)        # ragged last block handled by Pallas

    kernel = partial(_lstm_ae_kernel, out_dim=out_dim, compact=compact)
    out = pl.pallas_call(
        kernel,
        out_shape=jax.ShapeDtypeStruct((B, out_dim), jnp.float32),
        grid=grid,
        in_specs=[
            pl.BlockSpec((tb, Din), lambda b: (b, 0)),
            # Weight/bias blocks are grid-invariant (index_map -> (0, 0)): Mosaic DMAs
            # them once.  Default double-buffering kept on purpose (compile-safe; the
            # extra ~190 KB is noise against the 8 MiB VMEM budget below).
            pl.BlockSpec(we_p.shape, lambda b: (0, 0)),
            pl.BlockSpec(be_p.shape, lambda b: (0, 0)),
            pl.BlockSpec(wd_p.shape, lambda b: (0, 0)),
            pl.BlockSpec(bd_p.shape, lambda b: (0, 0)),
        ],
        out_specs=pl.BlockSpec((tb, out_dim), lambda b: (b, 0)),
        compiler_params=pltpu.CompilerParams(
            dimension_semantics=("parallel",),      # batch tiles split across v7x's 2 TCs
            vmem_limit_bytes=8 * 1024 * 1024,       # ~3 MiB live at TB=512; 8 MiB headroom
        ),
    )(x, we_p, be_p, wd_p, bd_p)

    return out.reshape(B) if out_dim == 1 else out


# ------------------------------------------------------------------ parameter packing


def init_raw_params(key, input_layer, hidden_layer, output_layer):
    """PyTorch-style uniform(-1/sqrt(H), 1/sqrt(H)) init for every parameter that can
    affect a seq_len==1, zero-initial-state forward.  (weight_hh_* and the forget gate
    never contribute: h0 = c0 = 0 and there is only one step — dropping them is exact.)"""
    k = jax.random.split(key, 6)
    s_e = 1.0 / sqrt(hidden_layer)
    s_d = 1.0 / sqrt(output_layer)
    return dict(
        w_ih_e=jax.random.uniform(k[0], (4 * hidden_layer, input_layer), jnp.float32, -s_e, s_e),
        b_ih_e=jax.random.uniform(k[1], (4 * hidden_layer,), jnp.float32, -s_e, s_e),
        b_hh_e=jax.random.uniform(k[2], (4 * hidden_layer,), jnp.float32, -s_e, s_e),
        w_ih_d=jax.random.uniform(k[3], (4 * output_layer, hidden_layer), jnp.float32, -s_d, s_d),
        b_ih_d=jax.random.uniform(k[4], (4 * output_layer,), jnp.float32, -s_d, s_d),
        b_hh_d=jax.random.uniform(k[5], (4 * output_layer,), jnp.float32, -s_d, s_d),
    )


def _pack_gates_padded(w_ih, b_ih, b_hh, n_out, in_dim, rows):
    """Encoder layout (and decoder fallback for large output_layer): drop the forget
    gate, transpose to (rows, 3*Np), pad each [i|g|o] gate block to a 128-lane boundary
    and zero-pad the contraction dim to `rows`."""
    Np = _round_up(n_out, _LANE)
    w = w_ih.reshape(4, n_out, in_dim)                 # torch gate order: i, f, g, o
    b = (b_ih + b_hh).reshape(4, n_out)
    wp = jnp.zeros((rows, 3 * Np), jnp.float32)
    bp = jnp.zeros((1, 3 * Np), jnp.float32)
    for dst, src in enumerate((0, 2, 3)):              # keep i, g, o
        wp = wp.at[:in_dim, dst * Np:dst * Np + n_out].set(w[src].T)
        bp = bp.at[0, dst * Np:dst * Np + n_out].set(b[src])
    return wp.astype(jnp.bfloat16), bp


def _pack_decoder_compact(w_ih, b_ih, b_hh, n_out, in_dim, rows):
    """Decoder layout for small output_layer (5*out_dim <= 128): all three gates packed
    into ONE 128-lane block, so the decoder matmul has 128 (not 384) output columns and
    the activations need only two tanh passes (sigmoid(x) = 0.5*tanh(x/2) + 0.5, with
    the 1/2 folded into the i/o weight & bias columns):
        lanes [0,O)   : g
        lanes [O,2O)  : i/2   (mirrored again at [L-O, L))
        lanes [2O,3O) : o/2   (mirrored again at [L-2O, L-O))
    The mirrored copies cost nothing (the MXU pass is 128 lanes wide either way) and
    make the in-kernel lane rotation insensitive to the rotate direction convention."""
    O, L = n_out, _LANE
    w = w_ih.reshape(4, n_out, in_dim)                 # torch gate order: i, f, g, o
    b = (b_ih + b_hh).reshape(4, n_out)
    wp = jnp.zeros((rows, L), jnp.float32)
    bp = jnp.zeros((1, L), jnp.float32)
    plan = ((2, 1.0, (0,)),                 # g
            (0, 0.5, (O, L - O)),           # i/2 (+ mirror)
            (3, 0.5, (2 * O, L - 2 * O)))   # o/2 (+ mirror)
    for src, scale, offs in plan:
        for off in offs:
            wp = wp.at[:in_dim, off:off + O].set(scale * w[src].T)
            bp = bp.at[0, off:off + O].set(scale * b[src])
    return wp.astype(jnp.bfloat16), bp


def pack_params(raw, input_layer, hidden_layer, output_layer):
    """Build kernel-layout params: bf16 weights, f32 biases, compact decoder if small."""
    Hp = _round_up(hidden_layer, _LANE)
    we_p, be_p = _pack_gates_padded(raw["w_ih_e"], raw["b_ih_e"], raw["b_hh_e"],
                                    hidden_layer, input_layer, input_layer)
    compact = 5 * output_layer <= _LANE
    if compact:
        wd_p, bd_p = _pack_decoder_compact(raw["w_ih_d"], raw["b_ih_d"], raw["b_hh_d"],
                                           output_layer, hidden_layer, Hp)
    else:
        wd_p, bd_p = _pack_gates_padded(raw["w_ih_d"], raw["b_ih_d"], raw["b_hh_d"],
                                        output_layer, hidden_layer, Hp)
    return we_p, be_p, wd_p, bd_p, output_layer, compact


# ---------------------------------------------------------------------- references


def reference_forward_module(x, raw):
    """Pure-JAX f32 reference of the original PyTorch module's forward."""
    def cell(xin, w_ih, b_ih, b_hh):
        g = xin @ w_ih.T + b_ih + b_hh
        i, _, c, o = jnp.split(g, 4, axis=-1)
        c_t = jax.nn.sigmoid(i) * jnp.tanh(c)          # f * c0 == 0
        return jax.nn.sigmoid(o) * jnp.tanh(c_t)
    h_e = cell(x, raw["w_ih_e"], raw["b_ih_e"], raw["b_hh_e"])
    y = cell(h_e, raw["w_ih_d"], raw["b_ih_d"], raw["b_hh_d"])
    return y[:, 0] if y.shape[1] == 1 else y


def reference_forward_packed(x, packed):
    """Plain-JAX mirror of exactly the kernel's math (bf16 weights, packed gates)."""
    we_p, be_p, wd_p, bd_p, out_dim, compact = packed
    Hp = we_p.shape[1] // 3
    g = jnp.dot(x.astype(jnp.bfloat16), we_p, preferred_element_type=jnp.float32) + be_p
    h = jax.nn.sigmoid(g[:, 2 * Hp:]) * jnp.tanh(
        jax.nn.sigmoid(g[:, :Hp]) * jnp.tanh(g[:, Hp:2 * Hp]))
    g2 = jnp.dot(h.astype(jnp.bfloat16), wd_p, preferred_element_type=jnp.float32) + bd_p
    if compact:
        O = out_dim
        t = jnp.tanh(g2)
        sig_i = 0.5 * t[:, O:2 * O] + 0.5
        sig_o = 0.5 * t[:, 2 * O:3 * O] + 0.5
        y = sig_o * jnp.tanh(sig_i * t[:, :O])
    else:
        Op = wd_p.shape[1] // 3
        y = jax.nn.sigmoid(g2[:, 2 * Op:3 * Op]) * jnp.tanh(
            jax.nn.sigmoid(g2[:, :Op]) * jnp.tanh(g2[:, Op:2 * Op]))
        y = y[:, :out_dim]
    return y.reshape(-1) if out_dim == 1 else y


# --------------------------------------------------------------------------- main


if __name__ == "__main__":
    # Module defaults: input_layer=120, hidden_layer=100, output_layer=1, batch_size=20
    INPUT_LAYER, HIDDEN_LAYER, OUTPUT_LAYER = 120, 100, 1

    key = jax.random.PRNGKey(0)
    k_p, k1, k2, k3, k_ps, k_xs = jax.random.split(key, 6)

    raw = init_raw_params(k_p, INPUT_LAYER, HIDDEN_LAYER, OUTPUT_LAYER)
    packed = pack_params(raw, INPUT_LAYER, HIDDEN_LAYER, OUTPUT_LAYER)

    # ---- module-default batch (20 rows -> two 16-row tiles, second one ragged) ----
    x = jax.random.normal(k1, (20, INPUT_LAYER), jnp.float32)
    y = jax.block_until_ready(lstm_autoencoder_forward(x, packed))
    assert y.shape == (20,)
    assert jnp.allclose(y, reference_forward_packed(x, packed), atol=1e-4, rtol=1e-4), \
        "mismatch vs packed bf16 reference"
    assert jnp.allclose(y, reference_forward_module(x, raw), atol=2e-2, rtol=2e-2), \
        "mismatch vs f32 module reference"

    # ---- mid-size batch: two parallel 152-row tiles, ragged last block ----
    x2 = jax.random.normal(k2, (300, INPUT_LAYER), jnp.float32)
    y2 = jax.block_until_ready(lstm_autoencoder_forward(x2, packed))
    assert y2.shape == (300,)
    assert jnp.allclose(y2, reference_forward_packed(x2, packed), atol=1e-4, rtol=1e-4)

    # ---- large awkward batch: cdiv grid of 512-row tiles, ragged last block ----
    x3 = jax.random.normal(k3, (1100, INPUT_LAYER), jnp.float32)
    y3 = jax.block_until_ready(lstm_autoencoder_forward(x3, packed))
    assert y3.shape == (1100,)
    assert jnp.allclose(y3, reference_forward_packed(x3, packed), atol=1e-4, rtol=1e-4)

    # ---- small config with output_layer > 1 (still the compact decoder path) ----
    raw_s = init_raw_params(k_ps, 64, 48, 8)
    packed_s = pack_params(raw_s, 64, 48, 8)
    xs = jax.random.normal(k_xs, (20, 64), jnp.float32)
    ys = jax.block_until_ready(lstm_autoencoder_forward(xs, packed_s))
    assert ys.shape == (20, 8)
    assert jnp.allclose(ys, reference_forward_packed(xs, packed_s), atol=1e-4, rtol=1e-4)
    assert jnp.allclose(ys, reference_forward_module(xs, raw_s), atol=2e-2, rtol=2e-2)

    print("KERNEL_OK")
</pallas_src>

<mosaic_0001>
module attributes {stable_mosaic.version = 11 : i64} {
  func.func @_lstm_ae_kernel(%arg0: i32, %arg1: memref<16x120xf32, #tpu.memory_space<vmem>>, %arg2: memref<120x384xbf16, #tpu.memory_space<vmem>>, %arg3: memref<1x384xf32, #tpu.memory_space<vmem>>, %arg4: memref<128x128xbf16, #tpu.memory_space<vmem>>, %arg5: memref<1x128xf32, #tpu.memory_space<vmem>>, %arg6: memref<16x1xf32, #tpu.memory_space<vmem>>) attributes {dimension_semantics = [#tpu.dimension_semantics<parallel>], iteration_bounds = array<i64: 2>, scalar_prefetch = 0 : i64, scratch_operands = 0 : i64, tpu.core_type = #tpu.core_type<tc>, window_params = [{transform_indices = @transform_0, window_bounds = array<i64: 16, 120>}, {pipeline_mode = #tpu.pipeline_mode<synchronous>, transform_indices = @transform_1, window_bounds = array<i64: 120, 384>}, {pipeline_mode = #tpu.pipeline_mode<synchronous>, transform_indices = @transform_2, window_bounds = array<i64: 1, 384>}, {pipeline_mode = #tpu.pipeline_mode<synchronous>, transform_indices = @transform_3, window_bounds = array<i64: 128, 128>}, {pipeline_mode = #tpu.pipeline_mode<synchronous>, transform_indices = @transform_4, window_bounds = array<i64: 1, 128>}, {transform_indices = @transform_5, window_bounds = array<i64: 16, 1>}]} {
    %c0 = arith.constant 0 : index
    %c0_0 = arith.constant 0 : index
    %0 = vector.load %arg1[%c0, %c0_0] : memref<16x120xf32, #tpu.memory_space<vmem>>, vector<16x120xf32>
    %1 = arith.truncf %0 : vector<16x120xf32> to vector<16x120xbf16>
    %c0_1 = arith.constant 0 : index
    %c0_2 = arith.constant 0 : index
    %2 = vector.load %arg2[%c0_1, %c0_2] : memref<120x384xbf16, #tpu.memory_space<vmem>>, vector<120x384xbf16>
    %cst = arith.constant dense<0.000000e+00> : vector<16x384xf32>
    %3 = tpu.matmul %1, %2, %cst {dimension_numbers = #tpu.dot_dimension_numbers<[1], [0], [0], [1], [0, 0, 1, 1], [], []>} : vector<16x120xbf16>, vector<120x384xbf16>, vector<16x384xf32> -> vector<16x384xf32>
    %c0_3 = arith.constant 0 : index
    %c0_4 = arith.constant 0 : index
    %4 = vector.load %arg3[%c0_3, %c0_4] : memref<1x384xf32, #tpu.memory_space<vmem>>, vector<1x384xf32>
    %5 = vector.broadcast %4 : vector<1x384xf32> to vector<16x384xf32>
    %6 = arith.addf %3, %5 : vector<16x384xf32>
    %7 = vector.extract_strided_slice %6 {offsets = [0, 0], sizes = [16, 128], strides = [1, 1]} : vector<16x384xf32> to vector<16x128xf32>
    %8 = arith.negf %7 : vector<16x128xf32>
    %9 = math.exp %8 : vector<16x128xf32>
    %cst_5 = arith.constant 1.000000e+00 : f32
    %10 = vector.broadcast %cst_5 : f32 to vector<16x128xf32>
    %11 = arith.addf %10, %9 : vector<16x128xf32>
    %12 = arith.divf %10, %11 : vector<16x128xf32>
    %13 = vector.extract_strided_slice %6 {offsets = [0, 128], sizes = [16, 128], strides = [1, 1]} : vector<16x384xf32> to vector<16x128xf32>
    %14 = math.tanh %13 : vector<16x128xf32>
    %15 = vector.extract_strided_slice %6 {offsets = [0, 256], sizes = [16, 128], strides = [1, 1]} : vector<16x384xf32> to vector<16x128xf32>
    %16 = arith.negf %15 : vector<16x128xf32>
    %17 = math.exp %16 : vector<16x128xf32>
    %cst_6 = arith.constant 1.000000e+00 : f32
    %18 = vector.broadcast %cst_6 : f32 to vector<16x128xf32>
    %19 = arith.addf %18, %17 : vector<16x128xf32>
    %20 = arith.divf %18, %19 : vector<16x128xf32>
    %21 = arith.mulf %12, %14 : vector<16x128xf32>
    %22 = math.tanh %21 : vector<16x128xf32>
    %23 = arith.mulf %20, %22 : vector<16x128xf32>
    %24 = arith.truncf %23 : vector<16x128xf32> to vector<16x128xbf16>
    %c0_7 = arith.constant 0 : index
    %c0_8 = arith.constant 0 : index
    %25 = vector.load %arg4[%c0_7, %c0_8] : memref<128x128xbf16, #tpu.memory_space<vmem>>, vector<128x128xbf16>
    %cst_9 = arith.constant dense<0.000000e+00> : vector<16x128xf32>
    %26 = tpu.matmul %24, %25, %cst_9 {dimension_numbers = #tpu.dot_dimension_numbers<[1], [0], [0], [1], [0, 0, 1, 1], [], []>} : vector<16x128xbf16>, vector<128x128xbf16>, vector<16x128xf32> -> vector<16x128xf32>
    %c0_10 = arith.constant 0 : index
    %c0_11 = arith.constant 0 : index
    %27 = vector.load %arg5[%c0_10, %c0_11] : memref<1x128xf32, #tpu.memory_space<vmem>>, vector<1x128xf32>
    %28 = vector.broadcast %27 : vector<1x128xf32> to vector<16x128xf32>
    %29 = arith.addf %26, %28 : vector<16x128xf32>
    %30 = math.tanh %29 : vector<16x128xf32>
    %c127_i32 = arith.constant 127 : i32
    %31 = tpu.dynamic_rotate %30 by %c127_i32 dim 1 : vector<16x128xf32>, i32 -> vector<16x128xf32>
    %cst_12 = arith.constant 5.000000e-01 : f32
    %32 = vector.broadcast %cst_12 : f32 to vector<16x128xf32>
    %33 = arith.mulf %32, %31 : vector<16x128xf32>
    %cst_13 = arith.constant 5.000000e-01 : f32
    %34 = vector.broadcast %cst_13 : f32 to vector<16x128xf32>
    %35 = arith.addf %33, %34 : vector<16x128xf32>
    %c126_i32 = arith.constant 126 : i32
    %36 = tpu.dynamic_rotate %30 by %c126_i32 dim 1 : vector<16x128xf32>, i32 -> vector<16x128xf32>
    %cst_14 = arith.constant 5.000000e-01 : f32
    %37 = vector.broadcast %cst_14 : f32 to vector<16x128xf32>
    %38 = arith.mulf %37, %36 : vector<16x128xf32>
    %cst_15 = arith.constant 5.000000e-01 : f32
    %39 = vector.broadcast %cst_15 : f32 to vector<16x128xf32>
    %40 = arith.addf %38, %39 : vector<16x128xf32>
    %41 = arith.mulf %35, %30 : vector<16x128xf32>
    %42 = math.tanh %41 : vector<16x128xf32>
    %43 = arith.mulf %40, %42 : vector<16x128xf32>
    %44 = vector.extract_strided_slice %43 {offsets = [0, 0], sizes = [16, 1], strides = [1, 1]} : vector<16x128xf32> to vector<16x1xf32>
    %c0_16 = arith.constant 0 : index
    %c0_17 = arith.constant 0 : index
    %45 = vector.load %arg6[%c0_16, %c0_17] : memref<16x1xf32, #tpu.memory_space<vmem>>, vector<16x1xf32>
    tpu.vector_store %arg6[%c0_16, %c0_17], %44 {strides = array<i32>} : memref<16x1xf32, #tpu.memory_space<vmem>>, vector<16x1xf32>,
    return
  }
  func.func @transform_0(%arg0: i32) -> (i32, i32) {
    %c0_i32 = arith.constant 0 : i32
    %c0_i32_0 = arith.constant 0 : i32
    return %arg0, %c0_i32 : i32, i32
  }
  func.func @transform_1(%arg0: i32) -> (i32, i32) {
    %c0_i32 = arith.constant 0 : i32
    %c0_i32_0 = arith.constant 0 : i32
    %c0_i32_1 = arith.constant 0 : i32
    return %c0_i32, %c0_i32_0 : i32, i32
  }
  func.func @transform_2(%arg0: i32) -> (i32, i32) {
    %c0_i32 = arith.constant 0 : i32
    %c0_i32_0 = arith.constant 0 : i32
    %c0_i32_1 = arith.constant 0 : i32
    return %c0_i32, %c0_i32_0 : i32, i32
  }
  func.func @transform_3(%arg0: i32) -> (i32, i32) {
    %c0_i32 = arith.constant 0 : i32
    %c0_i32_0 = arith.constant 0 : i32
    %c0_i32_1 = arith.constant 0 : i32
    return %c0_i32, %c0_i32_0 : i32, i32
  }
  func.func @transform_4(%arg0: i32) -> (i32, i32) {
    %c0_i32 = arith.constant 0 : i32
    %c0_i32_0 = arith.constant 0 : i32
    %c0_i32_1 = arith.constant 0 : i32
    return %c0_i32, %c0_i32_0 : i32, i32
  }
  func.func @transform_5(%arg0: i32) -> (i32, i32) {
    %c0_i32 = arith.constant 0 : i32
    %c0_i32_0 = arith.constant 0 : i32
    return %arg0, %c0_i32 : i32, i32
  }
}

</mosaic_0001>

<llo_original>
// kernel: tpu_custom_call.1
$region0: #{tpu_custom_call.1}
  #allocation0 [shape = 'u32[]', space=smem, size = 0x4, offset = 0x4, fixed_abs, tag = 'smem constant byte address 0x4 - core index']
  #allocation1 [shape = 'u32[144,128]{1,0:T(1,128)}', space=vmem, size = 0x12000, scoped, tag = 'internal scratch']
  %s0 = inlined_call_operand.hbm [shape: f32[20,120], index: 0, kind: input, shape index: {}]
  %s1 = inlined_call_operand.hbm [shape: bf16[120,384], index: 1, kind: input, shape index: {}]
  %s2 = inlined_call_operand.vmem [shape: f32[1,384], index: 2, kind: input, shape index: {}]
  %s3 = inlined_call_operand.hbm [shape: bf16[128,128], index: 3, kind: input, shape index: {}]
  %s4 = inlined_call_operand.vmem [shape: f32[1,128], index: 4, kind: input, shape index: {}]
  %s5 = inlined_call_operand.vmem [shape: f32[20,1], index: 5, kind: output, shape index: {}]
  %s6 = sld [smem:[#allocation0]]
  $region113: #{tpu_custom_call.1} parent=0
    _
  %s8 = ssub.s32 1, %s6
  %s9 = scalar_select 0, %s8, %s6
  $region1: #{tpu_custom_call.1} parent=0
    #allocation2 [shape = 'u8[16384]{0}', space=vmem, size = 0x4000, scoped, tag = 'input window, operand 0']
    #allocation3 [shape = 's32[2]{0}', space=sflag, size = 0x8, scoped, tag = 'scoped memory for tpu_custom_call.1']
    #allocation4 [shape = 'u8[92160]{0}', space=vmem, size = 0x16800, scoped, tag = 'input window, operand 1, single buffered']
    #allocation5 [shape = 's32[1]{0}', space=sflag, size = 0x4, scoped, tag = 'scoped memory for tpu_custom_call.1']
    #allocation6 [shape = 'u8[32768]{0}', space=vmem, size = 0x8000, scoped, tag = 'input window, operand 3, single buffered']
    #allocation7 [shape = 'u8[16384]{0}', space=vmem, size = 0x4000, scoped, tag = 'output window, operand 0']
    %10 = vsyncpa [#allocation3], 0
    %s11 = scalar_lea.sflag [#allocation3], 1
    %12 = vsyncpa %s11, 0
    %13 = vsyncpa [#allocation5], 0
    loop: start=0, step=1, limit=4
    $region2: #{tpu_custom_call.1} parent=1 // loop_pre_header
      _
    $region3: #{tpu_custom_call.1} parent=1 // loop_header
      %s15 = sphi 0, %s19
      %p16 = scmp.ge.s32.totalorder %s15, 4
      %s25 = sphi 0, %s27
      %s28 = sphi 0, %s25
      %s29 = sphi 0, %s28
      %s45 = sphi 0, %s29
      %s49 = sphi 0, %s49
      %s51 = sphi 0, %s49
      %s52 = sphi 0, %s51
      %s66 = sphi 0, %s52
      %s70 = sphi 0, %s70
      %s72 = sphi 0, %s70
      %s73 = sphi 0, %s72
      %s87 = sphi 0, %s73
      %s91 = sphi 0, %s91
      %s93 = sphi 0, %s91
      %s94 = sphi 0, %s93
      %s108 = sphi 0, %s94
      %s112 = sphi 0, %s112
      %s114 = sphi 0, %s112
      %s115 = sphi 0, %s114
      %s129 = sphi 0, %s115
      %s135 = sphi 0, %s137
      %s138 = sphi 0, %s135
      %s139 = sphi 0, %s138
      %s155 = sphi 0, %s139
    $region4: #{tpu_custom_call.1} parent=1 // loop_header_branch
      %18 = sbr.rel (%p16) target = $region8
    $region5: #{tpu_custom_call.1} parent=1 // loop_body
      %s20 = ssub.s32 %s15, 1
      %s21 = ssub.s32 %s15, 2
      %s22 = sadd.s32 %s15, 1
      %s23 = ssub.s32 %s15, %s22
      %p24 = scmp.eq.s32.totalorder %s23, 0
      %s26 = sadd.s32 %s25, 1
      %s27 = scalar_select %p24, %s25, %s26
      %p30 = pneg %p24
      %p31 = scmp.eq.s32.totalorder %s15, 1
      %p32 = por %p30, %p31
      %p33 = scmp.ne.s32.totalorder %s25, %s28
      %p34 = scmp.eq.s32.totalorder %s15, 0
      %p35 = por %p33, %p34
      %p36 = scmp.ne.s32.totalorder %s25, %s28
      %p37 = scmp.eq.s32.totalorder %s20, 1
      %p38 = por %p36, %p37
      %p39 = scmp.ne.s32.totalorder %s28, %s29
      %p40 = scmp.eq.s32.totalorder %s20, 0
      %p41 = por %p39, %p40
      %p42 = scmp.ne.s32.totalorder %s28, %s29
      %p43 = scmp.eq.s32.totalorder %s21, 1
      %p44 = por %p42, %p43
      %p46 = scmp.ne.s32.totalorder %s29, %s45
      %p47 = scmp.eq.s32.totalorder %s21, 0
      %p48 = por %p46, %p47
      %s50 = sadd.s32 %s49, 1
      %p53 = scmp.eq.s32.totalorder %s15, 1
      %p54 = scmp.ne.s32.totalorder %s49, %s51
      %p55 = scmp.eq.s32.totalorder %s15, 0
      %p56 = por %p54, %p55
      %p57 = scmp.ne.s32.totalorder %s49, %s51
      %p58 = scmp.eq.s32.totalorder %s20, 1
      %p59 = por %p57, %p58
      %p60 = scmp.ne.s32.totalorder %s51, %s52
      %p61 = scmp.eq.s32.totalorder %s20, 0
      %p62 = por %p60, %p61
      %p63 = scmp.ne.s32.totalorder %s51, %s52
      %p64 = scmp.eq.s32.totalorder %s21, 1
      %p65 = por %p63, %p64
      %p67 = scmp.ne.s32.totalorder %s52, %s66
      %p68 = scmp.eq.s32.totalorder %s21, 0
      %p69 = por %p67, %p68
      %s71 = sadd.s32 %s70, 1
      %p74 = scmp.eq.s32.totalorder %s15, 1
      %p75 = scmp.ne.s32.totalorder %s70, %s72
      %p76 = scmp.eq.s32.totalorder %s15, 0
      %p77 = por %p75, %p76
      %p78 = scmp.ne.s32.totalorder %s70, %s72
      %p79 = scmp.eq.s32.totalorder %s20, 1
      %p80 = por %p78, %p79
      %p81 = scmp.ne.s32.totalorder %s72, %s73
      %p82 = scmp.eq.s32.totalorder %s20, 0
      %p83 = por %p81, %p82
      %p84 = scmp.ne.s32.totalorder %s72, %s73
      %p85 = scmp.eq.s32.totalorder %s21, 1
      %p86 = por %p84, %p85
      %p88 = scmp.ne.s32.totalorder %s73, %s87
      %p89 = scmp.eq.s32.totalorder %s21, 0
      %p90 = por %p88, %p89
      %s92 = sadd.s32 %s91, 1
      %p95 = scmp.eq.s32.totalorder %s15, 1
      %p96 = scmp.ne.s32.totalorder %s91, %s93
      %p97 = scmp.eq.s32.totalorder %s15, 0
      %p98 = por %p96, %p97
      %p99 = scmp.ne.s32.totalorder %s91, %s93
      %p100 = scmp.eq.s32.totalorder %s20, 1
      %p101 = por %p99, %p100
      %p102 = scmp.ne.s32.totalorder %s93, %s94
      %p103 = scmp.eq.s32.totalorder %s20, 0
      %p104 = por %p102, %p103
      %p105 = scmp.ne.s32.totalorder %s93, %s94
      %p106 = scmp.eq.s32.totalorder %s21, 1
      %p107 = por %p105, %p106
      %p109 = scmp.ne.s32.totalorder %s94, %s108
      %p110 = scmp.eq.s32.totalorder %s21, 0
      %p111 = por %p109, %p110
      %s113 = sadd.s32 %s112, 1
      %p116 = scmp.eq.s32.totalorder %s15, 1
      %p117 = scmp.ne.s32.totalorder %s112, %s114
      %p118 = scmp.eq.s32.totalorder %s15, 0
      %p119 = por %p117, %p118
      %p120 = scmp.ne.s32.totalorder %s112, %s114
      %p121 = scmp.eq.s32.totalorder %s20, 1
      %p122 = por %p120, %p121
      %p123 = scmp.ne.s32.totalorder %s114, %s115
      %p124 = scmp.eq.s32.totalorder %s20, 0
      %p125 = por %p123, %p124
      %p126 = scmp.ne.s32.totalorder %s114, %s115
      %p127 = scmp.eq.s32.totalorder %s21, 1
      %p128 = por %p126, %p127
      %p130 = scmp.ne.s32.totalorder %s115, %s129
      %p131 = scmp.eq.s32.totalorder %s21, 0
      %p132 = por %p130, %p131
      %s133 = ssub.s32 %s15, %s22
      %p134 = scmp.eq.s32.totalorder %s133, 0
      %s136 = sadd.s32 %s135, 1
      %s137 = scalar_select %p134, %s135, %s136
      %p140 = pneg %p134
      %p141 = scmp.eq.s32.totalorder %s15, 1
      %p142 = por %p140, %p141
      %p143 = scmp.ne.s32.totalorder %s135, %s138
      %p144 = scmp.eq.s32.totalorder %s15, 0
      %p145 = por %p143, %p144
      %p146 = scmp.ne.s32.totalorder %s135, %s138
      %p147 = scmp.eq.s32.totalorder %s20, 1
      %p148 = por %p146, %p147
      %p149 = scmp.ne.s32.totalorder %s138, %s139
      %p150 = scmp.eq.s32.totalorder %s20, 0
      %p151 = por %p149, %p150
      %p152 = scmp.ne.s32.totalorder %s138, %s139
      %p153 = scmp.eq.s32.totalorder %s21, 1
      %p154 = por %p152, %p153
      %p156 = scmp.ne.s32.totalorder %s139, %s155
      %p157 = scmp.eq.s32.totalorder %s21, 0
      %p158 = por %p156, %p157
      %p159 = scmp.le.s32.totalorder 1, %s15
      %p160 = scmp.lt.s32.totalorder %s15, 3
      %p161 = pnand %p159, %p160
      %p162 = pneg %p161
      // Predicated region
      $region9: #{tpu_custom_call.1} parent=5 // pred_check
        _
      $region10: #{tpu_custom_call.1} parent=5 // pred_check_branch
        %164 = sbr.rel (%p161) target = $region12
      $region11: #{tpu_custom_call.1} parent=5 // pred_region
        %s165 = ssub.s32 %s15, 1
        // Predicated region
        $region13: #{tpu_custom_call.1} parent=11 // pred_check
          %p166 = pneg %p62
        $region14: #{tpu_custom_call.1} parent=11 // pred_check_branch
          %168 = sbr.rel (%p166) target = $region16
        $region15: #{tpu_custom_call.1} parent=11 // pred_region
          %s170 = ssub.s32 2880, 2880
          %171 = vsyncadd [#allocation5], %s170
          %s172 = sshll.u32 [#allocation4], 4
          %s173 = int_to_ptr.vmem [resolvable:$true] %s172
          %178 = dma.hbm_to_vmem [thread:$0]  %s1, 2880, %s173, [#allocation5], 192, 192, 12
        $region16: #{tpu_custom_call.1} parent=11 // pred_fallthru
          _
        // Predicated region
        $region17: #{tpu_custom_call.1} parent=11 // pred_check
          %p179 = pneg %p83
        $region18: #{tpu_custom_call.1} parent=11 // pred_check_branch
          %181 = sbr.rel (%p179) target = $region20
        $region19: #{tpu_custom_call.1} parent=11 // pred_region
          _
        $region20: #{tpu_custom_call.1} parent=11 // pred_fallthru
          _
        // Predicated region
        $region21: #{tpu_custom_call.1} parent=11 // pred_check
          %p182 = pneg %p104
        $region22: #{tpu_custom_call.1} parent=11 // pred_check_branch
          %184 = sbr.rel (%p182) target = $region24
        $region23: #{tpu_custom_call.1} parent=11 // pred_region
          %s186 = ssub.s32 1024, 1024
          %187 = vsyncadd [#allocation5], %s186
          %s188 = sshll.u32 [#allocation6], 4
          %s189 = int_to_ptr.vmem [resolvable:$true] %s188
          %194 = dma.hbm_to_vmem [thread:$0]  %s3, 1024, %s189, [#allocation5], 64, 64, 4
        $region24: #{tpu_custom_call.1} parent=11 // pred_fallthru
          _
        // Predicated region
        $region25: #{tpu_custom_call.1} parent=11 // pred_check
          %p195 = pneg %p125
        $region26: #{tpu_custom_call.1} parent=11 // pred_check_branch
          %197 = sbr.rel (%p195) target = $region28
        $region27: #{tpu_custom_call.1} parent=11 // pred_region
          _
        $region28: #{tpu_custom_call.1} parent=11 // pred_fallthru
          _
      $region12: #{tpu_custom_call.1} parent=5 // pred_fallthru
        _
      %p198 = scmp.lt.s32.totalorder %s15, 2
      // Predicated region
      $region29: #{tpu_custom_call.1} parent=5 // pred_check
        %p199 = pneg %p198
      $region30: #{tpu_custom_call.1} parent=5 // pred_check_branch
        %201 = sbr.rel (%p199) target = $region32
      $region31: #{tpu_custom_call.1} parent=5 // pred_region
        // Predicated region
        $region33: #{tpu_custom_call.1} parent=31 // pred_check
          %p202 = pneg %p35
        $region34: #{tpu_custom_call.1} parent=31 // pred_check_branch
          %204 = sbr.rel (%p202) target = $region36
        $region35: #{tpu_custom_call.1} parent=31 // pred_region
          %s205 = sand.u32 %s25, 1
          %s206 = scalar_lea.sflag [#allocation3], %s205
          %s207 = sand.u32 %s25, 1
          %s208 = smul.addr %s207, 16
          %s209 = scalar_lea.vmem [#allocation2], %s208
          %s210 = smul.u32 2, %s15
          %s211 = ssub.s32 3, %s210
          %p212 = scmp.lt.s32.totalorder %s211, 2
          %s213 = scalar_select %p212, %s211, 2
          %s214 = smul.u32 128, %s213
          %s216 = ssub.s32 256, %s214
          %217 = vsyncadd %s206, %s216
          %p218 = scmp.ne.s32.totalorder 0, %s214
          %s219 = smul.addr %s210, 128
          %s220 = scalar_lea.hbm %s0, %s219
          %s221 = smul.u32 8, %s213
          %s222 = sshll.u32 %s209, 4
          %s223 = int_to_ptr.vmem [resolvable:$true] %s222
          %s224 = sshll.u32 %s221, 4
          %228 = dma.hbm_to_vmem [thread:$0]  (%p218), %s220, %s224, %s223, %s206, 128, 128, 8
        $region36: #{tpu_custom_call.1} parent=31 // pred_fallthru
          _
      $region32: #{tpu_custom_call.1} parent=5 // pred_fallthru
        _
      %p229 = scmp.le.s32.totalorder 1, %s15
      %p230 = scmp.lt.s32.totalorder %s15, 3
      %p231 = pnand %p229, %p230
      %p232 = pneg %p231
      // Predicated region
      $region37: #{tpu_custom_call.1} parent=5 // pred_check
        _
      $region38: #{tpu_custom_call.1} parent=5 // pred_check_branch
        %234 = sbr.rel (%p231) target = $region40
      $region39: #{tpu_custom_call.1} parent=5 // pred_region
        %s235 = ssub.s32 %s15, 1
        %s236 = sand.u32 %s28, 1
        %s237 = scalar_lea.sflag [#allocation3], %s236
        %s238 = sand.u32 %s28, 1
        %s239 = smul.addr %s238, 16
        %s240 = scalar_lea.vmem [#allocation2], %s239
        // Predicated region
        $region41: #{tpu_custom_call.1} parent=39 // pred_check
          %p241 = pneg %p41
        $region42: #{tpu_custom_call.1} parent=39 // pred_check_branch
          %243 = sbr.rel (%p241) target = $region44
        $region43: #{tpu_custom_call.1} parent=39 // pred_region
          %244 = dma.done %s237, 256
        $region44: #{tpu_custom_call.1} parent=39 // pred_fallthru
          _
        // Predicated region
        $region45: #{tpu_custom_call.1} parent=39 // pred_check
          %p245 = pneg %p62
        $region46: #{tpu_custom_call.1} parent=39 // pred_check_branch
          %247 = sbr.rel (%p245) target = $region48
        $region47: #{tpu_custom_call.1} parent=39 // pred_region
          %248 = dma.done [#allocation5], 2880
        $region48: #{tpu_custom_call.1} parent=39 // pred_fallthru
          _
        // Predicated region
        $region49: #{tpu_custom_call.1} parent=39 // pred_check
          %p249 = pneg %p104
        $region50: #{tpu_custom_call.1} parent=39 // pred_check_branch
          %251 = sbr.rel (%p249) target = $region52
        $region51: #{tpu_custom_call.1} parent=39 // pred_region
          %252 = dma.done [#allocation5], 1024
        $region52: #{tpu_custom_call.1} parent=39 // pred_fallthru
          _
        %s253 = sand.u32 %s28, 1
        %s254 = scalar_lea.sflag [#allocation3], %s253
        %s255 = sand.u32 %s28, 1
        %s256 = smul.addr %s255, 16
        %s257 = scalar_lea.vmem [#allocation2], %s256
        %p258 = pneg %p41
        %p259 = pneg %p38
        %p260 = pneg %p62
        %p261 = pneg %p59
        %p262 = pneg %p83
        %p263 = pneg %p80
        %p264 = pneg %p104
        %p265 = pneg %p101
        %p266 = pneg %p125
        %p267 = pneg %p122
        %p268 = pneg %p151
        %p269 = pneg %p148
        %s270 = sand.u32 %s138, 1
        %s271 = sand.u32 %s138, 1
        %s272 = smul.addr %s271, 16
        %s273 = scalar_lea.vmem [#allocation7], %s272
        %s274 = smul.u32 2, %s20
        %s275 = ssub.s32 3, %s274
        %p276 = scmp.lt.s32.totalorder %s275, 2
        %s277 = scalar_select %p276, %s275, 2
        %s278 = smul.u32 128, %s277
        %s279 = smul.u32 2, %s20
        %s280 = ssub.s32 3, %s279
        %p281 = scmp.lt.s32.totalorder %s280, 2
        %s282 = scalar_select %p281, %s280, 2
        %s283 = smul.u32 128, %s282
        %v285 = vld [vmem:[%s240] sm:$0xff]
        %v286 = vld [vmem:[%s240 + $0x8] sm:$0xff]
        %v287 = vpack.c.bf16 %v286, %v285
        %v288 = vld [vmem:[#allocation4] sm:$0xff]
        %v289 = vld [vmem:[#allocation4 + $0x8] sm:$0xf]
        %v290 = vld [vmem:[#allocation4 + $0xc] sm:$0xff]
        %v291 = vld [vmem:[#allocation4 + $0x14] sm:$0xf]
        %v292 = vld [vmem:[#allocation4 + $0x18] sm:$0xff]
        %v293 = vld [vmem:[#allocation4 + $0x20] sm:$0xf]
        %v294 = vld [vmem:[#allocation4 + $0x24] sm:$0xff]
        %v295 = vld [vmem:[#allocation4 + $0x2c] sm:$0xf]
        %v296 = vld [vmem:[#allocation4 + $0x30] sm:$0xff]
        %v297 = vld [vmem:[#allocation4 + $0x38] sm:$0xf]
        %v298 = vld [vmem:[#allocation4 + $0x3c] sm:$0xff]
        %v299 = vld [vmem:[#allocation4 + $0x44] sm:$0xf]
        %v300 = vld [vmem:[#allocation4 + $0x48] sm:$0xff]
        %v301 = vld [vmem:[#allocation4 + $0x50] sm:$0xf]
        %v302 = vld [vmem:[#allocation4 + $0x54] sm:$0xff]
        %v303 = vld [vmem:[#allocation4 + $0x5c] sm:$0xf]
        %v304 = vld [vmem:[#allocation4 + $0x60] sm:$0xff]
        %v305 = vld [vmem:[#allocation4 + $0x68] sm:$0xf]
        %v306 = vld [vmem:[#allocation4 + $0x6c] sm:$0xff]
        %v307 = vld [vmem:[#allocation4 + $0x74] sm:$0xf]
        %v308 = vld [vmem:[#allocation4 + $0x78] sm:$0xff]
        %v309 = vld [vmem:[#allocation4 + $0x80] sm:$0xf]
        %v310 = vld [vmem:[#allocation4 + $0x84] sm:$0xff]
        %v311 = vld [vmem:[#allocation4 + $0x8c] sm:$0xf]
        %v312 = vld [vmem:[#allocation4 + $0x90] sm:$0xff]
        %v313 = vld [vmem:[#allocation4 + $0x98] sm:$0xf]
        %v314 = vld [vmem:[#allocation4 + $0x9c] sm:$0xff]
        %v315 = vld [vmem:[#allocation4 + $0xa4] sm:$0xf]
        %v316 = vld [vmem:[#allocation4 + $0xa8] sm:$0xff]
        %v317 = vld [vmem:[#allocation4 + $0xb0] sm:$0xf]
        %v318 = vld [vmem:[%s2] sm:$0x7]
        %v320 = vlaneseq
        %v321 = vshrl.u32 %v320, 7
        %v322 = vsub.s32 0, %v321
        %v323 = vrot.slane %v318, %v322
        %v324 = vlaneseq
        %v325 = vshrl.u32 %v324, 7
        %v326 = vsub.s32 1, %v325
        %v327 = vrot.slane %v318, %v326
        %v328 = vlaneseq
        %v329 = vshrl.u32 %v328, 7
        %v330 = vsub.s32 2, %v329
        %v331 = vrot.slane %v318, %v330
        %v365 = vunpack.c.l.b16 %v288
        %v366 = vunpack.c.h.b16 %v288
        %v367 = vunpack.c.l.b16 %v289
        %v368 = vunpack.c.l.b16 %v290
        %v369 = vunpack.c.h.b16 %v290
        %v370 = vunpack.c.l.b16 %v291
        %v371 = vunpack.c.l.b16 %v292
        %v372 = vunpack.c.h.b16 %v292
        %v373 = vunpack.c.l.b16 %v293
        %v374 = vunpack.c.l.b16 %v294
        %v375 = vunpack.c.h.b16 %v294
        %v376 = vunpack.c.l.b16 %v295
        %v377 = vunpack.c.l.b16 %v296
        %v378 = vunpack.c.h.b16 %v296
        %v379 = vunpack.c.l.b16 %v297
        %v380 = vunpack.c.l.b16 %v298
        %v381 = vunpack.c.h.b16 %v298
        %v382 = vunpack.c.l.b16 %v299
        %v383 = vunpack.c.l.b16 %v300
        %v384 = vunpack.c.h.b16 %v300
        %v385 = vunpack.c.l.b16 %v301
        %v386 = vunpack.c.l.b16 %v302
        %v387 = vunpack.c.h.b16 %v302
        %v388 = vunpack.c.l.b16 %v303
        %v389 = vunpack.c.l.b16 %v304
        %v390 = vunpack.c.h.b16 %v304
        %v391 = vunpack.c.l.b16 %v305
        %v392 = vunpack.c.l.b16 %v306
        %v393 = vunpack.c.h.b16 %v306
        %v394 = vunpack.c.l.b16 %v307
        %v395 = vunpack.c.l.b16 %v308
        %v396 = vunpack.c.h.b16 %v308
        %v397 = vunpack.c.l.b16 %v309
        %v398 = vunpack.c.l.b16 %v310
        %v399 = vunpack.c.h.b16 %v310
        %v400 = vunpack.c.l.b16 %v311
        %v401 = vunpack.c.l.b16 %v312
        %v402 = vunpack.c.h.b16 %v312
        %v403 = vunpack.c.l.b16 %v313
        %v404 = vunpack.c.l.b16 %v314
        %v405 = vunpack.c.h.b16 %v314
        %v406 = vunpack.c.l.b16 %v315
        %v407 = vunpack.c.l.b16 %v316
        %v408 = vunpack.c.h.b16 %v316
        %v409 = vunpack.c.l.b16 %v317
        %v410 = vpack.c.b16 %v368, %v365
        %v411 = vpack.c.b16 %v369, %v366
        %v412 = vpack.c.b16 %v370, %v367
        %v413 = vpack.c.b16 %v374, %v371
        %v414 = vpack.c.b16 %v375, %v372
        %v415 = vpack.c.b16 %v376, %v373
        %v416 = vpack.c.b16 %v380, %v377
        %v417 = vpack.c.b16 %v381, %v378
        %v418 = vpack.c.b16 %v382, %v379
        %v419 = vpack.c.b16 %v386, %v383
        %v420 = vpack.c.b16 %v387, %v384
        %v421 = vpack.c.b16 %v388, %v385
        %v422 = vpack.c.b16 %v392, %v389
        %v423 = vpack.c.b16 %v393, %v390
        %v424 = vpack.c.b16 %v394, %v391
        %v425 = vpack.c.b16 %v398, %v395
        %v426 = vpack.c.b16 %v399, %v396
        %v427 = vpack.c.b16 %v400, %v397
        %v428 = vpack.c.b16 %v404, %v401
        %v429 = vpack.c.b16 %v405, %v402
        %v430 = vpack.c.b16 %v406, %v403
        %v431 = vpack.c.b16 %v407, %v407
        %v432 = vpack.c.b16 %v408, %v408
        %v433 = vpack.c.b16 %v409, %v409
        %vm455 = vcmask 982016
        %v457 = vsel %vm455, %v287, 0
        %vm459 = vcmask 1043456
        %v461 = vsel %vm459, %v431, 0
        %v464 = vsel %vm459, %v432, 0
        %v467 = vsel %vm459, %v433, 0
        %469 = vmatprep.subr.bf16.mxu0 %v464
        %470 = vmatpush1.bf16.msra.mxu0 %v461
        %471 = vmatprep.subr.bf16.mxu0 %v429
        %472 = vmatpush1.bf16.msra.mxu0 %v428
        %473 = vmatprep.subr.bf16.mxu0 %v426
        %474 = vmatpush1.bf16.msra.mxu0 %v425
        %475 = vmatprep.subr.bf16.mxu0 %v423
        %476 = vmatpush1.bf16.msra.mxu0 %v422
        %477 = vmatprep.subr.bf16.mxu0 %v420
        %478 = vmatpush1.bf16.msra.mxu0 %v419
        %479 = vmatprep.subr.bf16.mxu0 %v417
        %480 = vmatpush1.bf16.msra.mxu0 %v416
        %481 = vmatprep.subr.bf16.mxu0 %v414
        %482 = vmatpush1.bf16.msra.mxu0 %v413
        %483 = vmatprep.subr.bf16.mxu0 %v411
        %484 = vmatpush1.bf16.msra.mxu0 %v410
        %485 = vmatprep.subr.bf16.mxu0 0
        %486 = vmatpush2.bf16.msra.mxu0 0
        %487 = vmatprep.subr.bf16.mxu0 0
        %488 = vmatpush2.bf16.msra.mxu0 0
        %489 = vmatprep.subr.bf16.mxu0 0
        %490 = vmatpush2.bf16.msra.mxu0 0
        %491 = vmatprep.subr.bf16.mxu0 0
        %492 = vmatpush2.bf16.msra.mxu0 0
        %493 = vmatprep.subr.bf16.mxu0 0
        %494 = vmatpush2.bf16.msra.mxu0 0
        %495 = vmatprep.subr.bf16.mxu0 0
        %496 = vmatpush2.bf16.msra.mxu0 0
        %497 = vmatprep.subr.bf16.mxu0 0
        %498 = vmatpush2.bf16.msra.mxu0 0
        %499 = vmatprep.subr.bf16.mxu0 0
        %500 = vmatpush2.bf16.msra.mxu0 0
        %501 = vmatprep.mubr.bf16.mxu0 0
        %502 = vmatmul.mubr.bf16.gmra.mxu0 %v457
        %v503 = vpop.f32.mrf.mxu0
        %v504 = vadd.f32 %v323, %v503
        %v505 = vpop.f32.mrf.mxu0
        %v506 = vadd.f32 %v327, %v505
        %v507 = vpop.f32.mrf.mxu0
        %v508 = vadd.f32 %v323, %v507
        %v509 = vpop.f32.mrf.mxu0
        %v510 = vadd.f32 %v327, %v509
        %511 = vdwg.mxu0
        %512 = vmatprep.subr.bf16.mxu0 0
        %513 = vmatpush1.bf16.msra.mxu0 %v467
        %514 = vmatprep.subr.bf16.mxu0 0
        %515 = vmatpush1.bf16.msra.mxu0 %v430
        %516 = vmatprep.subr.bf16.mxu0 0
        %517 = vmatpush1.bf16.msra.mxu0 %v427
        %518 = vmatprep.subr.bf16.mxu0 0
        %519 = vmatpush1.bf16.msra.mxu0 %v424
        %520 = vmatprep.subr.bf16.mxu0 0
        %521 = vmatpush1.bf16.msra.mxu0 %v421
        %522 = vmatprep.subr.bf16.mxu0 0
        %523 = vmatpush1.bf16.msra.mxu0 %v418
        %524 = vmatprep.subr.bf16.mxu0 0
        %525 = vmatpush1.bf16.msra.mxu0 %v415
        %526 = vmatprep.subr.bf16.mxu0 0
        %527 = vmatpush1.bf16.msra.mxu0 %v412
        %528 = vmatprep.subr.bf16.mxu0 0
        %529 = vmatpush2.bf16.msra.mxu0 0
        %530 = vmatprep.subr.bf16.mxu0 0
        %531 = vmatpush2.bf16.msra.mxu0 0
        %532 = vmatprep.subr.bf16.mxu0 0
        %533 = vmatpush2.bf16.msra.mxu0 0
        %534 = vmatprep.subr.bf16.mxu0 0
        %535 = vmatpush2.bf16.msra.mxu0 0
        %536 = vmatprep.subr.bf16.mxu0 0
        %537 = vmatpush2.bf16.msra.mxu0 0
        %538 = vmatprep.subr.bf16.mxu0 0
        %539 = vmatpush2.bf16.msra.mxu0 0
        %540 = vmatprep.subr.bf16.mxu0 0
        %541 = vmatpush2.bf16.msra.mxu0 0
        %542 = vmatprep.subr.bf16.mxu0 0
        %543 = vmatpush2.bf16.msra.mxu0 0
        %544 = vmatprep.mubr.bf16.mxu0 0
        %545 = vmatmul.mubr.bf16.gmra.mxu0 %v457
        %v546 = vpop.f32.mrf.mxu0
        %v547 = vadd.f32 %v331, %v546
        %v548 = vpop.f32.mrf.mxu0
        %v549 = vpop.f32.mrf.mxu0
        %v550 = vadd.f32 %v331, %v549
        %v551 = vpop.f32.mrf.mxu0
        %552 = vdwg.mxu0
        %v553 = vxor.u32 %v504, 2147483648
        %v554 = vxor.u32 %v508, 2147483648
        %v555 = vmul.f32 %v553, 1.442695
        %v556 = vpow.pop %v555
        %v557 = vmul.f32 %v554, 1.442695
        %v558 = vpow.pop %v557
        %v559 = vadd.f32 %v556, 1.0
        %v560 = vadd.f32 %v558, 1.0
        %v561 = vrcp.pop %v559
        %v562 = vmul.f32 1.0, %v561
        %v563 = vrcp.pop %v560
        %v564 = vmul.f32 1.0, %v563
        %v565 = vtanh.pop %v506
        %v566 = vtanh.pop %v510
        %v567 = vxor.u32 %v547, 2147483648
        %v568 = vxor.u32 %v550, 2147483648
        %v569 = vmul.f32 %v567, 1.442695
        %v570 = vpow.pop %v569
        %v571 = vmul.f32 %v568, 1.442695
        %v572 = vpow.pop %v571
        %v573 = vadd.f32 %v570, 1.0
        %v574 = vadd.f32 %v572, 1.0
        %v575 = vrcp.pop %v573
        %v576 = vmul.f32 1.0, %v575
        %v577 = vrcp.pop %v574
        %v578 = vmul.f32 1.0, %v577
        %v579 = vmul.f32 %v562, %v565
        %v580 = vmul.f32 %v564, %v566
        %v581 = vtanh.pop %v579
        %v582 = vtanh.pop %v580
        %v583 = vmul.f32 %v576, %v581
        %v584 = vmul.f32 %v578, %v582
        %v585 = vpack.c.bf16 %v584, %v583
        %v586 = vld [vmem:[#allocation6] sm:$0xf]
        %v587 = vld [vmem:[#allocation6 + $0x4] sm:$0xf]
        %v588 = vld [vmem:[#allocation6 + $0x8] sm:$0xf]
        %v589 = vld [vmem:[#allocation6 + $0xc] sm:$0xf]
        %v590 = vld [vmem:[#allocation6 + $0x10] sm:$0xf]
        %v591 = vld [vmem:[#allocation6 + $0x14] sm:$0xf]
        %v592 = vld [vmem:[#allocation6 + $0x18] sm:$0xf]
        %v593 = vld [vmem:[#allocation6 + $0x1c] sm:$0xf]
        %v594 = vld [vmem:[#allocation6 + $0x20] sm:$0xf]
        %v595 = vld [vmem:[#allocation6 + $0x24] sm:$0xf]
        %v596 = vld [vmem:[#allocation6 + $0x28] sm:$0xf]
        %v597 = vld [vmem:[#allocation6 + $0x2c] sm:$0xf]
        %v598 = vld [vmem:[#allocation6 + $0x30] sm:$0xf]
        %v599 = vld [vmem:[#allocation6 + $0x34] sm:$0xf]
        %v600 = vld [vmem:[#allocation6 + $0x38] sm:$0xf]
        %v601 = vld [vmem:[#allocation6 + $0x3c] sm:$0xf]
        %v602 = vld [vmem:[%s4] sm:$0x1]
        %v604 = vlaneseq
        %v605 = vshrl.u32 %v604, 7
        %v606 = vsub.s32 0, %v605
        %v607 = vrot.slane %v602, %v606
        %v625 = vunpack.c.l.b16 %v586
        %v626 = vunpack.c.l.b16 %v587
        %v627 = vunpack.c.l.b16 %v588
        %v628 = vunpack.c.l.b16 %v589
        %v629 = vunpack.c.l.b16 %v590
        %v630 = vunpack.c.l.b16 %v591
        %v631 = vunpack.c.l.b16 %v592
        %v632 = vunpack.c.l.b16 %v593
        %v633 = vunpack.c.l.b16 %v594
        %v634 = vunpack.c.l.b16 %v595
        %v635 = vunpack.c.l.b16 %v596
        %v636 = vunpack.c.l.b16 %v597
        %v637 = vunpack.c.l.b16 %v598
        %v638 = vunpack.c.l.b16 %v599
        %v639 = vunpack.c.l.b16 %v600
        %v640 = vunpack.c.l.b16 %v601
        %v641 = vpack.c.b16 %v626, %v625
        %v642 = vpack.c.b16 %v628, %v627
        %v643 = vpack.c.b16 %v630, %v629
        %v644 = vpack.c.b16 %v632, %v631
        %v645 = vpack.c.b16 %v634, %v633
        %v646 = vpack.c.b16 %v636, %v635
        %v647 = vpack.c.b16 %v638, %v637
        %v648 = vpack.c.b16 %v640, %v639
        %657 = vmatprep.subr.bf16.mxu0 0
        %658 = vmatpush1.bf16.msra.mxu0 %v648
        %659 = vmatprep.subr.bf16.mxu0 0
        %660 = vmatpush1.bf16.msra.mxu0 %v647
        %661 = vmatprep.subr.bf16.mxu0 0
        %662 = vmatpush1.bf16.msra.mxu0 %v646
        %663 = vmatprep.subr.bf16.mxu0 0
        %664 = vmatpush1.bf16.msra.mxu0 %v645
        %665 = vmatprep.subr.bf16.mxu0 0
        %666 = vmatpush1.bf16.msra.mxu0 %v644
        %667 = vmatprep.subr.bf16.mxu0 0
        %668 = vmatpush1.bf16.msra.mxu0 %v643
        %669 = vmatprep.subr.bf16.mxu0 0
        %670 = vmatpush1.bf16.msra.mxu0 %v642
        %671 = vmatprep.subr.bf16.mxu0 0
        %672 = vmatpush1.bf16.msra.mxu0 %v641
        %673 = vmatprep.subr.bf16.mxu0 0
        %674 = vmatpush2.bf16.msra.mxu0 0
        %675 = vmatprep.subr.bf16.mxu0 0
        %676 = vmatpush2.bf16.msra.mxu0 0
        %677 = vmatprep.subr.bf16.mxu0 0
        %678 = vmatpush2.bf16.msra.mxu0 0
        %679 = vmatprep.subr.bf16.mxu0 0
        %680 = vmatpush2.bf16.msra.mxu0 0
        %681 = vmatprep.subr.bf16.mxu0 0
        %682 = vmatpush2.bf16.msra.mxu0 0
        %683 = vmatprep.subr.bf16.mxu0 0
        %684 = vmatpush2.bf16.msra.mxu0 0
        %685 = vmatprep.subr.bf16.mxu0 0
        %686 = vmatpush2.bf16.msra.mxu0 0
        %687 = vmatprep.subr.bf16.mxu0 0
        %688 = vmatpush2.bf16.msra.mxu0 0
        %689 = vmatprep.mubr.bf16.mxu0 0
        %690 = vmatmul.mubr.bf16.gmra.mxu0 %v585
        %v691 = vpop.f32.mrf.mxu0
        %v692 = vadd.f32 %v607, %v691
        %v693 = vpop.f32.mrf.mxu0
        %v694 = vpop.f32.mrf.mxu0
        %v695 = vadd.f32 %v607, %v694
        %v696 = vpop.f32.mrf.mxu0
        %697 = vdwg.mxu0
        %v698 = vtanh.pop %v692
        %v699 = vtanh.pop %v695
        %700 = vrot.lane.b32.xlu0 %v698, 127
        %v701 = vpop.permute.xlu0 %700
        %702 = vrot.lane.b32.xlu0 %v699, 127
        %v703 = vpop.permute.xlu0 %702
        %v704 = vmul.f32 %v701, 0.5
        %v705 = vmul.f32 %v703, 0.5
        %v706 = vadd.f32 %v704, 0.5
        %v707 = vadd.f32 %v705, 0.5
        %708 = vrot.lane.b32.xlu0 %v698, 126
        %v709 = vpop.permute.xlu0 %708
        %710 = vrot.lane.b32.xlu0 %v699, 126
        %v711 = vpop.permute.xlu0 %710
        %v712 = vmul.f32 %v709, 0.5
        %v713 = vmul.f32 %v711, 0.5
        %v714 = vadd.f32 %v712, 0.5
        %v715 = vadd.f32 %v713, 0.5
        %v716 = vmul.f32 %v706, %v698
        %v717 = vmul.f32 %v707, %v699
        %v718 = vtanh.pop %v716
        %v719 = vtanh.pop %v717
        %v720 = vmul.f32 %v714, %v718
        %v721 = vmul.f32 %v715, %v719
        %vm722 = vcmask 7168
        %723 = vst.msk [vmem:[%s273] sm:$0xff] %vm722, %v720
        %724 = vst.msk [vmem:[%s273 + $0x8] sm:$0xff] %vm722, %v721
        %s725 = sand.u32 %s138, 1
        %s726 = sand.u32 %s138, 1
        %s727 = smul.addr %s726, 16
        %s728 = scalar_lea.vmem [#allocation7], %s727
        // Predicated region
        $region53: #{tpu_custom_call.1} parent=39 // pred_check
          %p729 = pneg %p148
        $region54: #{tpu_custom_call.1} parent=39 // pred_check_branch
          %731 = sbr.rel (%p729) target = $region56
        $region55: #{tpu_custom_call.1} parent=39 // pred_region
          %s732 = smul.u32 2, %s20
          %s733 = ssub.s32 3, %s732
          %p734 = scmp.lt.s32.totalorder %s733, 2
          %s735 = scalar_select %p734, %s733, 2
          %s736 = smul.u32 128, %s735
          %p737 = scmp.ne.s32.totalorder 0, %s736
          %s738 = smul.addr %s732, 8
          %s739 = scalar_lea.vmem %s5, %s738
          // Predicated region
          $region57: #{tpu_custom_call.1} parent=55 // pred_check
            %p740 = pneg %p737
          $region58: #{tpu_custom_call.1} parent=55 // pred_check_branch
            %742 = sbr.rel (%p740) target = $region60
          $region59: #{tpu_custom_call.1} parent=55 // pred_region
            // Predicated region
            $region61: #{tpu_custom_call.1} parent=59 // pred_check
              _
            $region62: #{tpu_custom_call.1} parent=59 // pred_check_branch
              %744 = sbr.rel (0) target = $region64
            $region63: #{tpu_custom_call.1} parent=59 // pred_region
              // Predicated region
              $region83: #{tpu_custom_call.1} parent=63 // pred_check
                _
              $region84: #{tpu_custom_call.1} parent=63 // pred_check_branch
                %796 = sbr.rel (0) target = $region86
              $region85: #{tpu_custom_call.1} parent=63 // pred_region
                %s797 = sshrl.u32 %s735, 1
                // While loop
                $region87: #{tpu_custom_call.1} parent=85 // loop_pre_header
                  _
                $region88: #{tpu_custom_call.1} parent=85 // loop_header
                  %s799 = sphi 0, %s801
                  %p800 = scmp.ge.s32.totalorder %s799, %s797
                  %s804 = sphi 0, %s813
                  %s805 = sphi %s728, %s816
                  %s806 = sphi %s739, %s817
                $region89: #{tpu_custom_call.1} parent=85 // loop_header_branch
                  %803 = sbr.rel (%p800) target = $region93
                $region90: #{tpu_custom_call.1} parent=85 // loop_body
                  %v807 = vld [vmem:[%s805] sm:$0xff]
                  %808 = vst [vmem:[%s806] sm:$0xff] %v807
                  %v809 = vld [vmem:[%s805 + $0x8] sm:$0xff]
                  %810 = vst [vmem:[%s806 + $0x8] sm:$0xff] %v809
                  %s811 = sadd.s32 1, %s804
                  %p812 = scmp.ge.s32.totalorder %s811, %s797
                  %s813 = scalar_select %p812, 0, %s811
                  %s814 = smul.u32 %s813, 16
                  %s815 = smul.u32 %s813, 16
                  %s816 = scalar_lea.vmem %s728, %s814 [#allocation7]
                  %s817 = scalar_lea.vmem %s739, %s815
                $region91: #{tpu_custom_call.1} parent=85 // loop_footer
                  %s801 = sadd.s32 %s799, 1
                $region92: #{tpu_custom_call.1} parent=85 // loop_footer_branch
                  %798 = sbr.rel target = $region88
                $region93: #{tpu_custom_call.1} parent=85 // loop_exit
                  _
                %s818 = sshrl.u32 %s735, 1
                %s819 = sand.u32 %s735, 1
                %s820 = smul.u32 %s818, 2
                %s821 = smul.u32 8, %s820
                %s822 = scalar_lea.vmem %s728, %s821 [#allocation7]
                %s823 = smul.u32 8, %s820
                %s824 = scalar_lea.vmem %s739, %s823
                // While loop
                $region94: #{tpu_custom_call.1} parent=85 // loop_pre_header
                  _
                $region95: #{tpu_custom_call.1} parent=85 // loop_header
                  %s826 = sphi 0, %s828
                  %p827 = scmp.ge.s32.totalorder %s826, %s819
                  %s831 = sphi 0, %s838
                  %s832 = sphi %s822, %s841
                  %s833 = sphi %s824, %s842
                $region96: #{tpu_custom_call.1} parent=85 // loop_header_branch
                  %830 = sbr.rel (%p827) target = $region100
                $region97: #{tpu_custom_call.1} parent=85 // loop_body
                  %v834 = vld [vmem:[%s832] sm:$0xff]
                  %835 = vst [vmem:[%s833] sm:$0xff] %v834
                  %s836 = sadd.s32 1, %s831
                  %p837 = scmp.ge.s32.totalorder %s836, %s819
                  %s838 = scalar_select %p837, 0, %s836
                  %s839 = smul.u32 %s838, 8
                  %s840 = smul.u32 %s838, 8
                  %s841 = scalar_lea.vmem %s822, %s839 [#allocation7]
                  %s842 = scalar_lea.vmem %s824, %s840
                $region98: #{tpu_custom_call.1} parent=85 // loop_footer
                  %s828 = sadd.s32 %s826, 1
                $region99: #{tpu_custom_call.1} parent=85 // loop_footer_branch
                  %825 = sbr.rel target = $region95
                $region100: #{tpu_custom_call.1} parent=85 // loop_exit
                  _
              $region86: #{tpu_custom_call.1} parent=63 // pred_fallthru
                _
              // Predicated region
              $region101: #{tpu_custom_call.1} parent=63 // pred_check
                _
              $region102: #{tpu_custom_call.1} parent=63 // pred_check_branch
                %844 = sbr.rel target = $region104
              $region103: #{tpu_custom_call.1} parent=63 // pred_region
                _
              $region104: #{tpu_custom_call.1} parent=63 // pred_fallthru
                _
            $region64: #{tpu_custom_call.1} parent=59 // pred_fallthru
              _
            // Predicated region
            $region65: #{tpu_custom_call.1} parent=59 // pred_check
              _
            $region66: #{tpu_custom_call.1} parent=59 // pred_check_branch
              %746 = sbr.rel target = $region68
            $region67: #{tpu_custom_call.1} parent=59 // pred_region
              %s748 = ssub.s32 256, 1
              %s749 = sshrl.u32 %s735, 1
              // While loop
              $region69: #{tpu_custom_call.1} parent=67 // loop_pre_header
                _
              $region70: #{tpu_custom_call.1} parent=67 // loop_header
                %s751 = sphi 0, %s753
                %p752 = scmp.ge.s32.totalorder %s751, %s749
                %s756 = sphi 0, %s765
                %s757 = sphi %s728, %s768
                %s758 = sphi %s739, %s769
              $region71: #{tpu_custom_call.1} parent=67 // loop_header_branch
                %755 = sbr.rel (%p752) target = $region75
              $region72: #{tpu_custom_call.1} parent=67 // loop_body
                %v759 = vld [vmem:[%s757] sm:%s748]
                %760 = vst [vmem:[%s758] sm:%s748] %v759
                %v761 = vld [vmem:[%s757 + $0x8] sm:%s748]
                %762 = vst [vmem:[%s758 + $0x8] sm:%s748] %v761
                %s763 = sadd.s32 1, %s756
                %p764 = scmp.ge.s32.totalorder %s763, %s749
                %s765 = scalar_select %p764, 0, %s763
                %s766 = smul.u32 %s765, 16
                %s767 = smul.u32 %s765, 16
                %s768 = scalar_lea.vmem %s728, %s766 [#allocation7]
                %s769 = scalar_lea.vmem %s739, %s767
              $region73: #{tpu_custom_call.1} parent=67 // loop_footer
                %s753 = sadd.s32 %s751, 1
              $region74: #{tpu_custom_call.1} parent=67 // loop_footer_branch
                %750 = sbr.rel target = $region70
              $region75: #{tpu_custom_call.1} parent=67 // loop_exit
                _
              %s770 = sshrl.u32 %s735, 1
              %s771 = sand.u32 %s735, 1
              %s772 = smul.u32 %s770, 2
              %s773 = smul.u32 8, %s772
              %s774 = scalar_lea.vmem %s728, %s773 [#allocation7]
              %s775 = smul.u32 8, %s772
              %s776 = scalar_lea.vmem %s739, %s775
              // While loop
              $region76: #{tpu_custom_call.1} parent=67 // loop_pre_header
                _
              $region77: #{tpu_custom_call.1} parent=67 // loop_header
                %s778 = sphi 0, %s780
                %p779 = scmp.ge.s32.totalorder %s778, %s771
                %s783 = sphi 0, %s790
                %s784 = sphi %s774, %s793
                %s785 = sphi %s776, %s794
              $region78: #{tpu_custom_call.1} parent=67 // loop_header_branch
                %782 = sbr.rel (%p779) target = $region82
              $region79: #{tpu_custom_call.1} parent=67 // loop_body
                %v786 = vld [vmem:[%s784] sm:%s748]
                %787 = vst [vmem:[%s785] sm:%s748] %v786
                %s788 = sadd.s32 1, %s783
                %p789 = scmp.ge.s32.totalorder %s788, %s771
                %s790 = scalar_select %p789, 0, %s788
                %s791 = smul.u32 %s790, 8
                %s792 = smul.u32 %s790, 8
                %s793 = scalar_lea.vmem %s774, %s791 [#allocation7]
                %s794 = scalar_lea.vmem %s776, %s792
              $region80: #{tpu_custom_call.1} parent=67 // loop_footer
                %s780 = sadd.s32 %s778, 1
              $region81: #{tpu_custom_call.1} parent=67 // loop_footer_branch
                %777 = sbr.rel target = $region77
              $region82: #{tpu_custom_call.1} parent=67 // loop_exit
                _
            $region68: #{tpu_custom_call.1} parent=59 // pred_fallthru
              _
          $region60: #{tpu_custom_call.1} parent=55 // pred_fallthru
            _
          %845 = vnop
        $region56: #{tpu_custom_call.1} parent=39 // pred_fallthru
          _
      $region40: #{tpu_custom_call.1} parent=5 // pred_fallthru
        _
      %p846 = scmp.le.s32.totalorder 2, %s15
      // Predicated region
      $region105: #{tpu_custom_call.1} parent=5 // pred_check
        %p847 = pneg %p846
      $region106: #{tpu_custom_call.1} parent=5 // pred_check_branch
        %849 = sbr.rel (%p847) target = $region108
      $region107: #{tpu_custom_call.1} parent=5 // pred_region
        %s850 = ssub.s32 %s15, 2
        // Predicated region
        $region109: #{tpu_custom_call.1} parent=107 // pred_check
          %p851 = pneg %p154
        $region110: #{tpu_custom_call.1} parent=107 // pred_check_branch
          %853 = sbr.rel (%p851) target = $region112
        $region111: #{tpu_custom_call.1} parent=107 // pred_region
          %s854 = sand.u32 %s139, 1
          %s855 = sand.u32 %s139, 1
          %s856 = smul.addr %s855, 16
          %s857 = scalar_lea.vmem [#allocation7], %s856
        $region112: #{tpu_custom_call.1} parent=107 // pred_fallthru
          _
      $region108: #{tpu_custom_call.1} parent=5 // pred_fallthru
        _
    $region6: #{tpu_custom_call.1} parent=1 // loop_footer
      %s19 = sadd.s32 1, %s15
    $region7: #{tpu_custom_call.1} parent=1 // loop_footer_branch
      %14 = sbr.rel target = $region3
    $region8: #{tpu_custom_call.1} parent=1 // loop_exit
      _
    %858 = vsyncpa [#allocation3], 1
    %s859 = scalar_lea.sflag [#allocation3], 1
    %860 = vsyncpa %s859, 1
    %861 = vsyncpa [#allocation5], 1

</llo_original>
